<compile_context>
chip_gen: v5e
topology: v5e:2x2
jax: 0.10.0
libtpu: 0.0.40
codegen_flags: <defaults>
</compile_context>

<pallas_src>
import functools

import jax
import jax.numpy as jnp
from jax import lax
from jax.experimental import pallas as pl
from jax.experimental.pallas import tpu as pltpu

BN_EPS = 1e-4       # reference model uses nn.BatchNorm2d(..., eps=0.0001)
LANE = 128


def _round_up(x, m):
    return (x + m - 1) // m * m


# ------------------------------ Pallas kernels ------------------------------

def _conv_bn_kernel(x_ref, w_ref, g_ref, b_ref, o_ref, *, do_sign, eps):
    """Fused 3x3-conv (single im2col matmul) + training-mode BatchNorm + BinaryTanh.

    x_ref: (M, K) im2col rows (M = N*Ho*Wo output positions, K = 9*Cin),
    w_ref: (K, 128) output-channel tile, g_ref/b_ref: (1, 128), o_ref: (M, 128).
    BN stats are per-channel, so per-Cout-tile statistics are exact.
    BinaryTanh == sign(x) (tanh monotone, sign(0)=+1)."""
    y = jnp.dot(x_ref[...], w_ref[...], preferred_element_type=jnp.float32)
    m = y.shape[0]
    s = jnp.sum(y, axis=0, keepdims=True)
    ss = jnp.sum(y * y, axis=0, keepdims=True)
    mean = s / m
    var = jnp.maximum(ss / m - mean * mean, 0.0)
    scale = lax.rsqrt(var + eps) * g_ref[...]
    y = y * scale + (b_ref[...] - mean * scale)
    if do_sign:
        y = jnp.where(y >= 0.0, 1.0, -1.0)
    o_ref[...] = y.astype(o_ref.dtype)


def _convt_bn_kernel(x_ref, w00_ref, w01_ref, w10_ref, w11_ref,
                     m01_ref, m10_ref, g_ref, b_ref,
                     o00_ref, o01_ref, o10_ref, o11_ref, *, total, do_sign, eps):
    """Fused 4-phase ConvTranspose2d(k=3, s=2, p=1) + BatchNorm + BinaryTanh.

    Output position (2i+di, 2j+dj) only touches the flipped-kernel taps with
    (kh+di) and (kw+dj) odd, applied to the UNDILATED input.
    x_ref: (M, 4*Cin) = [x | x(:,j+1) | x(i+1,:) | x(i+1,j+1)],  M = N*H*W.
    w{di}{dj}_ref stacks that phase's taps along K.  m01/m10: (M, 1) masks of
    rows whose odd-phase outputs lie inside the valid (2H-1, 2W-1) output;
    `total` = N*(2H-1)*(2W-1), so BN stats match a BatchNorm over the true
    output exactly."""
    cin = w00_ref.shape[0]
    x = x_ref[...]
    p00 = jnp.dot(x[:, :cin], w00_ref[...], preferred_element_type=jnp.float32)
    p01 = jnp.dot(x[:, :2 * cin], w01_ref[...], preferred_element_type=jnp.float32)
    x10 = jnp.concatenate([x[:, :cin], x[:, 2 * cin:3 * cin]], axis=1)
    p10 = jnp.dot(x10, w10_ref[...], preferred_element_type=jnp.float32)
    p11 = jnp.dot(x, w11_ref[...], preferred_element_type=jnp.float32)

    m01 = m01_ref[...]
    m10 = m10_ref[...]
    m11 = m01 * m10

    s = (jnp.sum(p00, axis=0, keepdims=True)
         + jnp.sum(p01 * m01, axis=0, keepdims=True)
         + jnp.sum(p10 * m10, axis=0, keepdims=True)
         + jnp.sum(p11 * m11, axis=0, keepdims=True))
    ss = (jnp.sum(p00 * p00, axis=0, keepdims=True)
          + jnp.sum(p01 * p01 * m01, axis=0, keepdims=True)
          + jnp.sum(p10 * p10 * m10, axis=0, keepdims=True)
          + jnp.sum(p11 * p11 * m11, axis=0, keepdims=True))
    mean = s / total
    var = jnp.maximum(ss / total - mean * mean, 0.0)
    scale = lax.rsqrt(var + eps) * g_ref[...]
    shift = b_ref[...] - mean * scale

    def act(p):
        y = p * scale + shift
        if do_sign:
            y = jnp.where(y >= 0.0, 1.0, -1.0)
        return y

    o00_ref[...] = act(p00).astype(o00_ref.dtype)
    o01_ref[...] = act(p01).astype(o01_ref.dtype)
    o10_ref[...] = act(p10).astype(o10_ref.dtype)
    o11_ref[...] = act(p11).astype(o11_ref.dtype)


# -------------------------------- wrappers ----------------------------------

def _pad_bn_params(gamma, beta, cp):
    cout = gamma.shape[0]
    g = jnp.pad(gamma, (0, cp - cout), constant_values=1.0).reshape(1, cp)
    b = jnp.pad(beta, (0, cp - cout)).reshape(1, cp)
    return g, b


def conv3x3_bn_act(x_nhwc, w, gamma, beta, *, stride=1, do_sign=True,
                   compute_dtype=jnp.bfloat16):
    """3x3 conv (pad=1, stride in {1,2}, bias folded out) + BatchNorm(batch stats)
    + optional BinaryTanh as one Pallas call, gridded over 128-lane Cout tiles.
    w: (3, 3, Cin, Cout)."""
    N, H, W, Cin = x_nhwc.shape
    Cout = w.shape[-1]
    Ho = (H - 1) // stride + 1
    Wo = (W - 1) // stride + 1
    M = N * Ho * Wo
    K = 9 * Cin

    # im2col emitted directly at the strided output positions: (M, 9*Cin),
    # K ordered (kh, kw, cin) to match w.reshape(9*Cin, Cout).
    xp = jnp.pad(x_nhwc, ((0, 0), (1, 1), (1, 1), (0, 0)))
    cols = [xp[:, kh:kh + stride * (Ho - 1) + 1:stride,
               kw:kw + stride * (Wo - 1) + 1:stride, :].reshape(M, Cin)
            for kh in range(3) for kw in range(3)]
    xs = jnp.concatenate(cols, axis=-1).astype(compute_dtype)

    cp = _round_up(Cout, LANE)                      # lane-dense in-kernel stores
    wf = jnp.pad(w.reshape(K, Cout), ((0, 0), (0, cp - Cout))).astype(compute_dtype)
    g, b = _pad_bn_params(gamma, beta, cp)

    out_dtype = jnp.bfloat16 if do_sign else jnp.float32   # +-1 exact in bf16
    y = pl.pallas_call(
        functools.partial(_conv_bn_kernel, do_sign=do_sign, eps=BN_EPS),
        grid=(cp // LANE,),
        in_specs=[
            pl.BlockSpec((M, K), lambda j: (0, 0)),         # im2col stays resident
            pl.BlockSpec((K, LANE), lambda j: (0, j)),
            pl.BlockSpec((1, LANE), lambda j: (0, j)),
            pl.BlockSpec((1, LANE), lambda j: (0, j)),
        ],
        out_specs=pl.BlockSpec((M, LANE), lambda j: (0, j)),
        out_shape=jax.ShapeDtypeStruct((M, cp), out_dtype),
        compiler_params=pltpu.CompilerParams(dimension_semantics=("parallel",)),
    )(xs, wf, g, b)
    return y[:, :Cout].reshape(N, Ho, Wo, Cout)


def convtranspose3x3_s2_bn_act(x_nhwc, w_t, gamma, beta, *, do_sign=True,
                               compute_dtype=jnp.bfloat16):
    """ConvTranspose2d(k=3, s=2, p=1, bias folded out) + BatchNorm + optional
    BinaryTanh via the 4-phase subpixel decomposition (no zero-dilation).
    w_t: (Cin, Cout, 3, 3) — PyTorch ConvTranspose2d layout."""
    N, H, W, Cin = x_nhwc.shape
    Cout = w_t.shape[1]
    M = N * H * W
    wf = jnp.flip(w_t, axis=(2, 3)).transpose(2, 3, 0, 1)    # (kh, kw, Cin, Cout)

    # shifted copies of the undilated input (zeros beyond the edge)
    x = x_nhwc
    x_r = jnp.pad(x, ((0, 0), (0, 0), (0, 1), (0, 0)))[:, :, 1:, :]
    x_d = jnp.pad(x, ((0, 0), (0, 1), (0, 0), (0, 0)))[:, 1:, :, :]
    x_rd = jnp.pad(x, ((0, 0), (0, 1), (0, 1), (0, 0)))[:, 1:, 1:, :]
    xs = jnp.concatenate([a.reshape(M, Cin) for a in (x, x_r, x_d, x_rd)],
                         axis=-1).astype(compute_dtype)

    # per-phase weights; row order matches the xs column blocks used by each phase
    w00 = wf[1, 1]                                           # phase (0,0): [x]
    w01 = jnp.concatenate([wf[1, 0], wf[1, 2]], axis=0)      # phase (0,1): [x; x_r]
    w10 = jnp.concatenate([wf[0, 1], wf[2, 1]], axis=0)      # phase (1,0): [x; x_d]
    w11 = jnp.concatenate([wf[0, 0], wf[0, 2], wf[2, 0], wf[2, 2]], axis=0)

    cp = _round_up(Cout, LANE)
    pad_w = ((0, 0), (0, cp - Cout))
    w00, w01, w10, w11 = (jnp.pad(wm, pad_w).astype(compute_dtype)
                          for wm in (w00, w01, w10, w11))
    g, b = _pad_bn_params(gamma, beta, cp)

    # validity masks: odd-phase rows at i == H-1 / j == W-1 fall outside the
    # (2H-1, 2W-1) output and must not enter the BN statistics.
    col_ok = (jnp.arange(W) < W - 1).astype(jnp.float32)
    row_ok = (jnp.arange(H) < H - 1).astype(jnp.float32)
    m01 = jnp.broadcast_to(col_ok[None, None, :], (N, H, W)).reshape(M, 1)
    m10 = jnp.broadcast_to(row_ok[None, :, None], (N, H, W)).reshape(M, 1)

    out_dtype = jnp.bfloat16 if do_sign else jnp.float32
    out_sh = jax.ShapeDtypeStruct((M, cp), out_dtype)
    p00, p01, p10, p11 = pl.pallas_call(
        functools.partial(_convt_bn_kernel,
                          total=float(N * (2 * H - 1) * (2 * W - 1)),
                          do_sign=do_sign, eps=BN_EPS),
        out_shape=(out_sh, out_sh, out_sh, out_sh),
    )(xs, w00, w01, w10, w11, m01, m10, g, b)

    # interleave the 4 phases into the (2H-1, 2W-1) output
    ph = jnp.stack([p00, p01, p10, p11], axis=1)[:, :, :Cout]
    ph = ph.reshape(N, H, W, 2, 2, Cout).transpose(0, 1, 3, 2, 4, 5)
    return ph.reshape(N, 2 * H, 2 * W, Cout)[:, :2 * H - 1, :2 * W - 1, :]


# --------------------------------- model ------------------------------------

def binarize(w):
    # SignActivation: >= 0 -> +1, < 0 -> -1
    return jnp.where(w >= 0, 1.0, -1.0).astype(jnp.float32)


def init_params(key):
    # NOTE: conv biases are omitted — every conv is immediately followed by
    # training-mode BatchNorm whose mean subtraction cancels the bias exactly,
    # so the forward output is identical.
    params = {"enc": [], "dec": []}
    enc = [(3, 64, False, 1), (64, 64, True, 1), (64, 128, True, 2),
           (128, 128, True, 1), (128, 256, True, 2), (256, 256, True, 1)]
    for cin, cout, binz, stride in enc:
        key, k1 = jax.random.split(key)
        params["enc"].append(dict(
            w=0.1 * jax.random.normal(k1, (3, 3, cin, cout), jnp.float32),
            gamma=jnp.ones((cout,), jnp.float32),
            beta=jnp.zeros((cout,), jnp.float32),
            binarize=binz, stride=stride))
    dec = [("convT", 256, 128), ("conv", 128, 128),
           ("convT", 128, 64), ("conv", 64, 64), ("conv", 64, 11)]
    for kind, cin, cout in dec:
        key, k1 = jax.random.split(key)
        if kind == "convT":
            w = 0.1 * jax.random.normal(k1, (cin, cout, 3, 3), jnp.float32)
        else:
            w = 0.1 * jax.random.normal(k1, (3, 3, cin, cout), jnp.float32)
        params["dec"].append(dict(
            kind=kind, w=w,
            gamma=jnp.ones((cout,), jnp.float32),
            beta=jnp.zeros((cout,), jnp.float32)))
    return params


def model_forward(x_nchw, params):
    x = jnp.transpose(x_nchw, (0, 2, 3, 1)).astype(jnp.float32)   # NCHW -> NHWC
    # encoders
    for p in params["enc"]:
        if p["binarize"]:
            w, dt = binarize(p["w"]), jnp.bfloat16     # +-1 weights / activations
        else:
            w, dt = p["w"], jnp.float32                # first conv: real-valued
        x = conv3x3_bn_act(x, w, p["gamma"], p["beta"], stride=p["stride"],
                           do_sign=True, compute_dtype=dt)
    # decoders (last layer: BN only, no BinaryTanh)
    n_dec = len(params["dec"])
    for i, p in enumerate(params["dec"]):
        w = binarize(p["w"])
        sign = i != n_dec - 1
        if p["kind"] == "convT":
            x = convtranspose3x3_s2_bn_act(x, w, p["gamma"], p["beta"], do_sign=sign)
        else:
            x = conv3x3_bn_act(x, w, p["gamma"], p["beta"], stride=1, do_sign=sign)
    return jnp.transpose(x, (0, 3, 1, 2))   # NHWC -> NCHW
    # TODO(synk): BatchNorm running-stat buffer updates (momentum=0.5) are training
    # bookkeeping only and do not affect the forward output; not modeled.


# ---------------------------- self check + main ------------------------------

def _bn_ref(y, gamma, beta):
    mean = y.mean(axis=(0, 1, 2))
    var = ((y - mean) ** 2).mean(axis=(0, 1, 2))
    return (y - mean) * lax.rsqrt(var + BN_EPS) * gamma + beta


def _self_check():
    key = jax.random.PRNGKey(42)
    ks = jax.random.split(key, 8)
    N, Cout = 2, 24                      # Cout < 128 -> exercises lane padding
    gamma = 1.0 + 0.1 * jax.random.normal(ks[0], (Cout,), jnp.float32)
    beta = 0.1 * jax.random.normal(ks[1], (Cout,), jnp.float32)

    # fused conv+BN (f32 real data; bf16 +-1 data) vs lax.conv reference
    Cin = 8
    w = jax.random.normal(ks[2], (3, 3, Cin, Cout), jnp.float32)
    wb = binarize(w)
    for spatial in (6, 5):
        xr = jax.random.normal(ks[3], (N, spatial, spatial, Cin), jnp.float32)
        xb = binarize(xr)
        for stride in (1, 2):
            for xin, wi, dt, tol in ((xr, w, jnp.float32, 5e-2),
                                     (xb, wb, jnp.bfloat16, 1e-2)):
                ref = _bn_ref(lax.conv_general_dilated(
                    xin, wi, (stride, stride), ((1, 1), (1, 1)),
                    dimension_numbers=("NHWC", "HWIO", "NHWC"),
                    precision=lax.Precision.HIGHEST), gamma, beta)
                got = conv3x3_bn_act(xin, wi, gamma, beta, stride=stride,
                                     do_sign=False, compute_dtype=dt)
                assert jnp.allclose(ref, got, atol=tol, rtol=tol), (spatial, stride)

    # fused 4-phase convT+BN vs zero-dilated lax.conv reference
    Cin_t = 128
    wt = binarize(jax.random.normal(ks[4], (Cin_t, Cout, 3, 3), jnp.float32))
    w_conv = jnp.flip(wt, axis=(2, 3)).transpose(2, 3, 0, 1)
    for spatial in (4, 5):
        xb = binarize(jax.random.normal(ks[5], (N, spatial, spatial, Cin_t),
                                        jnp.float32))
        ref = _bn_ref(lax.conv_general_dilated(
            xb, w_conv, (1, 1), ((1, 1), (1, 1)), lhs_dilation=(2, 2),
            dimension_numbers=("NHWC", "HWIO", "NHWC"),
            precision=lax.Precision.HIGHEST), gamma, beta)
        got = convtranspose3x3_s2_bn_act(xb, wt, gamma, beta, do_sign=False)
        assert jnp.allclose(ref, got, atol=1e-2, rtol=1e-2), ("convT", spatial)


if __name__ == "__main__":
    _self_check()

    key = jax.random.PRNGKey(0)
    key, kx = jax.random.split(key)
    x = jax.random.normal(kx, (2, 3, 16, 16), jnp.float32)   # NCHW, like PyTorch
    params = init_params(key)

    fwd = jax.jit(functools.partial(model_forward, params=params))
    out = fwd(x)
    jax.block_until_ready(out)
    # spatial: 16 -> 16 -> 8 -> 8 -> 4 -> 4 (enc); 4 -> 7 -> 7 -> 13 -> 13 -> 13 (dec)
    assert out.shape == (2, 11, 13, 13), out.shape
    assert bool(jnp.all(jnp.isfinite(out)))
    print("KERNEL_OK")
</pallas_src>

<mosaic_0001>
module attributes {stable_mosaic.version = 11 : i64} {
  func.func @_conv_bn_kernel(%arg0: i32, %arg1: memref<72x72xf32, #tpu.memory_space<vmem>>, %arg2: memref<72x128xf32, #tpu.memory_space<vmem>>, %arg3: memref<1x128xf32, #tpu.memory_space<vmem>>, %arg4: memref<1x128xf32, #tpu.memory_space<vmem>>, %arg5: memref<72x128xf32, #tpu.memory_space<vmem>>) attributes {dimension_semantics = [#tpu.dimension_semantics<parallel>], iteration_bounds = array<i64: 1>, scalar_prefetch = 0 : i64, scratch_operands = 0 : i64, tpu.core_type = #tpu.core_type<tc>, window_params = [{pipeline_mode = #tpu.pipeline_mode<synchronous>, transform_indices = @transform_0, window_bounds = array<i64: 72, 72>}, {transform_indices = @transform_1, window_bounds = array<i64: 72, 128>}, {transform_indices = @transform_2, window_bounds = array<i64: 1, 128>}, {transform_indices = @transform_3, window_bounds = array<i64: 1, 128>}, {transform_indices = @transform_4, window_bounds = array<i64: 72, 128>}]} {
    %c0 = arith.constant 0 : index
    %c0_0 = arith.constant 0 : index
    %0 = vector.load %arg1[%c0, %c0_0] : memref<72x72xf32, #tpu.memory_space<vmem>>, vector<72x72xf32>
    %c0_1 = arith.constant 0 : index
    %c0_2 = arith.constant 0 : index
    %1 = vector.load %arg2[%c0_1, %c0_2] : memref<72x128xf32, #tpu.memory_space<vmem>>, vector<72x128xf32>
    %cst = arith.constant dense<0.000000e+00> : vector<72x128xf32>
    %2 = tpu.matmul %0, %1, %cst {dimension_numbers = #tpu.dot_dimension_numbers<[1], [0], [0], [1], [0, 0, 1, 1], [], []>} : vector<72x72xf32>, vector<72x128xf32>, vector<72x128xf32> -> vector<72x128xf32>
    %cst_3 = arith.constant dense<0.000000e+00> : vector<128xf32>
    %3 = vector.multi_reduction <add>, %2, %cst_3 [0] : vector<72x128xf32> to vector<128xf32>
    %4 = vector.shape_cast %3 : vector<128xf32> to vector<1x128xf32>
    %5 = arith.mulf %2, %2 : vector<72x128xf32>
    %cst_4 = arith.constant dense<0.000000e+00> : vector<128xf32>
    %6 = vector.multi_reduction <add>, %5, %cst_4 [0] : vector<72x128xf32> to vector<128xf32>
    %7 = vector.shape_cast %6 : vector<128xf32> to vector<1x128xf32>
    %cst_5 = arith.constant 7.200000e+01 : f32
    %8 = vector.broadcast %cst_5 : f32 to vector<1x128xf32>
    %9 = arith.divf %4, %8 : vector<1x128xf32>
    %cst_6 = arith.constant 7.200000e+01 : f32
    %10 = vector.broadcast %cst_6 : f32 to vector<1x128xf32>
    %11 = arith.divf %7, %10 : vector<1x128xf32>
    %12 = arith.mulf %9, %9 : vector<1x128xf32>
    %13 = arith.subf %11, %12 : vector<1x128xf32>
    %cst_7 = arith.constant 0.000000e+00 : f32
    %14 = vector.broadcast %cst_7 : f32 to vector<1x128xf32>
    %15 = arith.maximumf %13, %14 : vector<1x128xf32>
    %cst_8 = arith.constant 9.99999974E-5 : f32
    %16 = vector.broadcast %cst_8 : f32 to vector<1x128xf32>
    %17 = arith.addf %15, %16 : vector<1x128xf32>
    %18 = math.rsqrt %17 : vector<1x128xf32>
    %c0_9 = arith.constant 0 : index
    %c0_10 = arith.constant 0 : index
    %19 = vector.load %arg3[%c0_9, %c0_10] : memref<1x128xf32, #tpu.memory_space<vmem>>, vector<1x128xf32>
    %20 = arith.mulf %18, %19 : vector<1x128xf32>
    %21 = vector.broadcast %20 : vector<1x128xf32> to vector<72x128xf32>
    %22 = arith.mulf %2, %21 : vector<72x128xf32>
    %c0_11 = arith.constant 0 : index
    %c0_12 = arith.constant 0 : index
    %23 = vector.load %arg4[%c0_11, %c0_12] : memref<1x128xf32, #tpu.memory_space<vmem>>, vector<1x128xf32>
    %24 = arith.mulf %9, %20 : vector<1x128xf32>
    %25 = arith.subf %23, %24 : vector<1x128xf32>
    %26 = vector.broadcast %25 : vector<1x128xf32> to vector<72x128xf32>
    %27 = arith.addf %22, %26 : vector<72x128xf32>
    %c0_13 = arith.constant 0 : index
    %c0_14 = arith.constant 0 : index
    %28 = vector.load %arg5[%c0_13, %c0_14] : memref<72x128xf32, #tpu.memory_space<vmem>>, vector<72x128xf32>
    tpu.vector_store %arg5[%c0_13, %c0_14], %27 {strides = array<i32>} : memref<72x128xf32, #tpu.memory_space<vmem>>, vector<72x128xf32>,
    return
  }
  func.func @transform_0(%arg0: i32) -> (i32, i32) {
    %c0_i32 = arith.constant 0 : i32
    %c0_i32_0 = arith.constant 0 : i32
    %c0_i32_1 = arith.constant 0 : i32
    return %c0_i32, %c0_i32_0 : i32, i32
  }
  func.func @transform_1(%arg0: i32) -> (i32, i32) {
    %c0_i32 = arith.constant 0 : i32
    %c0_i32_0 = arith.constant 0 : i32
    return %c0_i32, %arg0 : i32, i32
  }
  func.func @transform_2(%arg0: i32) -> (i32, i32) {
    %c0_i32 = arith.constant 0 : i32
    %c0_i32_0 = arith.constant 0 : i32
    return %c0_i32, %arg0 : i32, i32
  }
  func.func @transform_3(%arg0: i32) -> (i32, i32) {
    %c0_i32 = arith.constant 0 : i32
    %c0_i32_0 = arith.constant 0 : i32
    return %c0_i32, %arg0 : i32, i32
  }
  func.func @transform_4(%arg0: i32) -> (i32, i32) {
    %c0_i32 = arith.constant 0 : i32
    %c0_i32_0 = arith.constant 0 : i32
    return %c0_i32, %arg0 : i32, i32
  }
}

</mosaic_0001>

<llo_original>
// kernel: tpu_custom_call.1
$region0: #{tpu_custom_call.1}
  #allocation0 [shape = 'u32[]', space=smem, size = 0x4, offset = 0x4, fixed_abs, tag = 'smem constant byte address 0x4 - core index']
  #allocation1 [shape = 'u32[72,128]{1,0:T(1,128)}', space=vmem, size = 0x9000, scoped, tag = 'internal scratch']
  %s0 = inlined_call_operand.hbm [shape: f32[72,72], index: 0, kind: input, shape index: {}]
  %s1 = inlined_call_operand.hbm [shape: f32[72,128], index: 1, kind: input, shape index: {}]
  %s2 = inlined_call_operand.vmem [shape: f32[1,128], index: 2, kind: input, shape index: {}]
  %s3 = inlined_call_operand.vmem [shape: f32[1,128], index: 3, kind: input, shape index: {}]
  %s4 = inlined_call_operand.hbm [shape: f32[72,128], index: 4, kind: output, shape index: {}]
  %s5 = sld [smem:[#allocation0]]
  $region34: #{tpu_custom_call.1} parent=0
    _
  %s7 = ssub.s32 1, %s5
  %s8 = scalar_select 0, %s7, %s5
  $region1: #{tpu_custom_call.1} parent=0
    #allocation2 [shape = 'u8[36864]{0}', space=vmem, size = 0x9000, scoped, tag = 'input window, operand 0, single buffered']
    #allocation3 [shape = 's32[1]{0}', space=sflag, size = 0x4, scoped, tag = 'scoped memory for tpu_custom_call.1']
    #allocation4 [shape = 's32[1]{0}', space=sflag, size = 0x4, scoped, tag = 'scoped memory for tpu_custom_call.1']
    #allocation5 [shape = 'u8[36864]{0}', space=vmem, size = 0x9000, scoped, tag = 'input window, operand 1, single buffered']
    #allocation6 [shape = 's32[1]{0}', space=sflag, size = 0x4, scoped, tag = 'scoped memory for tpu_custom_call.1']
    #allocation7 [shape = 'u8[36864]{0}', space=vmem, size = 0x9000, scoped, tag = 'output window, operand 0, single buffered']
    %9 = vsyncpa [#allocation3], 0
    %10 = vsyncpa [#allocation6], 0
    %11 = vsyncpa [#allocation4], 0
    // Predicated region
    $region2: #{tpu_custom_call.1} parent=1 // pred_check
      _
    $region3: #{tpu_custom_call.1} parent=1 // pred_check_branch
      %13 = sbr.rel (0) target = $region5
    $region4: #{tpu_custom_call.1} parent=1 // pred_region
      %15 = vsyncadd [#allocation3], 0
      %s16 = sshll.u32 %s0, 4
      %s17 = int_to_ptr.hbm [resolvable:$true] %s16
      %s18 = sshll.u32 [#allocation2], 4
      %s19 = int_to_ptr.vmem [resolvable:$true] %s18
      %24 = dma.hbm_to_vmem [thread:$0]  %s17, 1152, %s19, [#allocation3], 128, 128, 8
    $region5: #{tpu_custom_call.1} parent=1 // pred_fallthru
      _
    // Predicated region
    $region6: #{tpu_custom_call.1} parent=1 // pred_check
      _
    $region7: #{tpu_custom_call.1} parent=1 // pred_check_branch
      %26 = sbr.rel (0) target = $region9
    $region8: #{tpu_custom_call.1} parent=1 // pred_region
      %28 = vsyncadd [#allocation6], 0
      %s29 = sshll.u32 %s1, 4
      %s30 = int_to_ptr.hbm [resolvable:$true] %s29
      %s31 = sshll.u32 [#allocation5], 4
      %s32 = int_to_ptr.vmem [resolvable:$true] %s31
      %37 = dma.hbm_to_vmem [thread:$0]  %s30, 1152, %s32, [#allocation6], 128, 128, 8
    $region9: #{tpu_custom_call.1} parent=1 // pred_fallthru
      _
    // Predicated region
    $region10: #{tpu_custom_call.1} parent=1 // pred_check
      _
    $region11: #{tpu_custom_call.1} parent=1 // pred_check_branch
      %39 = sbr.rel (0) target = $region13
    $region12: #{tpu_custom_call.1} parent=1 // pred_region
      _
    $region13: #{tpu_custom_call.1} parent=1 // pred_fallthru
      _
    // Predicated region
    $region14: #{tpu_custom_call.1} parent=1 // pred_check
      _
    $region15: #{tpu_custom_call.1} parent=1 // pred_check_branch
      %41 = sbr.rel (0) target = $region17
    $region16: #{tpu_custom_call.1} parent=1 // pred_region
      _
    $region17: #{tpu_custom_call.1} parent=1 // pred_fallthru
      _
    // Predicated region
    $region18: #{tpu_custom_call.1} parent=1 // pred_check
      _
    $region19: #{tpu_custom_call.1} parent=1 // pred_check_branch
      %43 = sbr.rel (0) target = $region21
    $region20: #{tpu_custom_call.1} parent=1 // pred_region
      %45 = dma.done [#allocation3], 1152
    $region21: #{tpu_custom_call.1} parent=1 // pred_fallthru
      _
    // Predicated region
    $region22: #{tpu_custom_call.1} parent=1 // pred_check
      _
    $region23: #{tpu_custom_call.1} parent=1 // pred_check_branch
      %47 = sbr.rel (0) target = $region25
    $region24: #{tpu_custom_call.1} parent=1 // pred_region
      %49 = dma.done [#allocation6], 1152
    $region25: #{tpu_custom_call.1} parent=1 // pred_fallthru
      _
    %v50 = vld [vmem:[#allocation2] sm:$0xff]
    %v51 = vld [vmem:[#allocation2 + $0x8] sm:$0xff]
    %v52 = vld [vmem:[#allocation2 + $0x10] sm:$0xff]
    %v53 = vld [vmem:[#allocation2 + $0x18] sm:$0xff]
    %v54 = vld [vmem:[#allocation2 + $0x20] sm:$0xff]
    %v55 = vld [vmem:[#allocation2 + $0x28] sm:$0xff]
    %v56 = vld [vmem:[#allocation2 + $0x30] sm:$0xff]
    %v57 = vld [vmem:[#allocation2 + $0x38] sm:$0xff]
    %v58 = vld [vmem:[#allocation2 + $0x40] sm:$0xff]
    %v59 = vld [vmem:[#allocation5] sm:$0xff]
    %v60 = vld [vmem:[#allocation5 + $0x8] sm:$0xff]
    %v61 = vld [vmem:[#allocation5 + $0x10] sm:$0xff]
    %v62 = vld [vmem:[#allocation5 + $0x18] sm:$0xff]
    %v63 = vld [vmem:[#allocation5 + $0x20] sm:$0xff]
    %v64 = vld [vmem:[#allocation5 + $0x28] sm:$0xff]
    %v65 = vld [vmem:[#allocation5 + $0x30] sm:$0xff]
    %v66 = vld [vmem:[#allocation5 + $0x38] sm:$0xff]
    %v67 = vld [vmem:[#allocation5 + $0x40] sm:$0xff]
    %vm68 = vcmask 588800
    %v70 = vsel %vm68, %v50, 0
    %v73 = vsel %vm68, %v51, 0
    %v76 = vsel %vm68, %v52, 0
    %v79 = vsel %vm68, %v53, 0
    %v82 = vsel %vm68, %v54, 0
    %v85 = vsel %vm68, %v55, 0
    %v88 = vsel %vm68, %v56, 0
    %v91 = vsel %vm68, %v57, 0
    %v94 = vsel %vm68, %v58, 0
    %96 = vmatpush.msra.mxu0 0.0
    %97 = vmatpush.msra.mxu0 0.0
    %98 = vmatpush.msra.mxu0 0.0
    %99 = vmatpush.msra.mxu0 0.0
    %100 = vmatpush.msra.mxu0 0.0
    %101 = vmatpush.msra.mxu0 0.0
    %102 = vmatpush.msra.mxu0 0.0
    %103 = vmatpush.msra.mxu0 %v67
    %104 = vmatpush.msra.mxu0 %v66
    %105 = vmatpush.msra.mxu0 %v65
    %106 = vmatpush.msra.mxu0 %v64
    %107 = vmatpush.msra.mxu0 %v63
    %108 = vmatpush.msra.mxu0 %v62
    %109 = vmatpush.msra.mxu0 %v61
    %110 = vmatpush.msra.mxu0 %v60
    %111 = vmatpush.msra.mxu0 %v59
    %112 = vmatmul.f32.gmra.mxu0 %v70
    %v113 = vpop.f32.mrf.mxu0
    %v114 = vadd.f32 0.0, %v113
    %115 = vmatmul.f32.gmra.mxu0 %v73
    %v116 = vpop.f32.mrf.mxu0
    %v117 = vadd.f32 0.0, %v116
    %118 = vmatmul.f32.gmra.mxu0 %v76
    %v119 = vpop.f32.mrf.mxu0
    %v120 = vadd.f32 0.0, %v119
    %121 = vmatmul.f32.gmra.mxu0 %v79
    %v122 = vpop.f32.mrf.mxu0
    %v123 = vadd.f32 0.0, %v122
    %124 = vmatmul.f32.gmra.mxu0 %v82
    %v125 = vpop.f32.mrf.mxu0
    %v126 = vadd.f32 0.0, %v125
    %127 = vmatmul.f32.gmra.mxu0 %v85
    %v128 = vpop.f32.mrf.mxu0
    %v129 = vadd.f32 0.0, %v128
    %130 = vmatmul.f32.gmra.mxu0 %v88
    %v131 = vpop.f32.mrf.mxu0
    %v132 = vadd.f32 0.0, %v131
    %133 = vmatmul.f32.gmra.mxu0 %v91
    %v134 = vpop.f32.mrf.mxu0
    %v135 = vadd.f32 0.0, %v134
    %136 = vmatmul.f32.gmra.mxu0 %v94
    %v137 = vpop.f32.mrf.mxu0
    %v138 = vadd.f32 0.0, %v137
    %139 = vdwg.mxu0
    %v140 = vadd.f32 %v114, %v117
    %v141 = vadd.f32 %v140, %v120
    %v142 = vadd.f32 %v141, %v123
    %v143 = vadd.f32 %v142, %v126
    %v144 = vadd.f32 %v143, %v129
    %v145 = vadd.f32 %v144, %v132
    %v146 = vadd.f32 %v145, %v135
    %v147 = vadd.f32 %v146, %v138
    %v148 = vrot.slane %v147, 4
    %v149 = vadd.f32 %v147, %v148
    %v150 = vrot.slane %v149, 2
    %v151 = vadd.f32 %v149, %v150
    %v152 = vrot.slane %v151, 1
    %v153 = vadd.f32 %v151, %v152
    %v154 = vmul.f32 %v114, %v114
    %v155 = vmul.f32 %v117, %v117
    %v156 = vmul.f32 %v120, %v120
    %v157 = vmul.f32 %v123, %v123
    %v158 = vmul.f32 %v126, %v126
    %v159 = vmul.f32 %v129, %v129
    %v160 = vmul.f32 %v132, %v132
    %v161 = vmul.f32 %v135, %v135
    %v162 = vmul.f32 %v138, %v138
    %v163 = vadd.f32 %v154, %v155
    %v164 = vadd.f32 %v163, %v156
    %v165 = vadd.f32 %v164, %v157
    %v166 = vadd.f32 %v165, %v158
    %v167 = vadd.f32 %v166, %v159
    %v168 = vadd.f32 %v167, %v160
    %v169 = vadd.f32 %v168, %v161
    %v170 = vadd.f32 %v169, %v162
    %v171 = vrot.slane %v170, 4
    %v172 = vadd.f32 %v170, %v171
    %v173 = vrot.slane %v172, 2
    %v174 = vadd.f32 %v172, %v173
    %v175 = vrot.slane %v174, 1
    %v176 = vadd.f32 %v174, %v175
    %v177 = vrcp.pop 72.0
    %v178 = vmul.f32 72.0, %v177
    %v179 = vsub.f32 1.0, %v178
    %v180 = vmul.f32 %v177, %v179
    %v181 = vadd.f32 %v177, %v180
    %vm182 = vweird.f32 %v177
    %v183 = vsel %vm182, %v177, %v181
    %v184 = vmul.f32 %v153, %v183
    %v185 = vmul.f32 %v176, %v183
    %v186 = vmul.f32 %v184, %v184
    %v187 = vsub.f32 %v185, %v186
    %v188 = vmax.f32 %v187, 0.0
    %v189 = vadd.f32 %v188, 0.0001
    %v190 = vrsqrt.pop %v189
    %v191 = vmul.f32 %v190, %v189
    %v192 = vmul.f32 %v191, %v190
    %v193 = vmul.f32 0.5, %v192
    %v194 = vsub.f32 1.5, %v193
    %v195 = vmul.f32 %v190, %v194
    %vm196 = vweird.f32 %v189
    %vm197 = vweird.f32 %v190
    %vm198 = vmor %vm196, %vm197
    %v199 = vsel %vm198, %v190, %v195
    %v200 = vld [vmem:[%s2] sm:$0x1]
    %v201 = vmul.f32 %v199, %v200
    %v202 = vperm.slane %v201, 0
    %v203 = vmul.f32 %v114, %v202
    %v204 = vmul.f32 %v117, %v202
    %v205 = vmul.f32 %v120, %v202
    %v206 = vmul.f32 %v123, %v202
    %v207 = vmul.f32 %v126, %v202
    %v208 = vmul.f32 %v129, %v202
    %v209 = vmul.f32 %v132, %v202
    %v210 = vmul.f32 %v135, %v202
    %v211 = vmul.f32 %v138, %v202
    %v212 = vld [vmem:[%s3] sm:$0x1]
    %v213 = vmul.f32 %v184, %v201
    %v214 = vsub.f32 %v212, %v213
    %v216 = vperm.slane %v214, 0
    %v218 = vadd.f32 %v203, %v216
    %v219 = vadd.f32 %v204, %v216
    %v220 = vadd.f32 %v205, %v216
    %v221 = vadd.f32 %v206, %v216
    %v222 = vadd.f32 %v207, %v216
    %v223 = vadd.f32 %v208, %v216
    %v224 = vadd.f32 %v209, %v216
    %v225 = vadd.f32 %v210, %v216
    %v226 = vadd.f32 %v211, %v216
    %227 = vst [vmem:[#allocation7] sm:$0xff] %v218
    %228 = vst [vmem:[#allocation7 + $0x8] sm:$0xff] %v219
    %229 = vst [vmem:[#allocation7 + $0x10] sm:$0xff] %v220
    %230 = vst [vmem:[#allocation7 + $0x18] sm:$0xff] %v221
    %231 = vst [vmem:[#allocation7 + $0x20] sm:$0xff] %v222
    %232 = vst [vmem:[#allocation7 + $0x28] sm:$0xff] %v223
    %233 = vst [vmem:[#allocation7 + $0x30] sm:$0xff] %v224
    %234 = vst [vmem:[#allocation7 + $0x38] sm:$0xff] %v225
    %235 = vst [vmem:[#allocation7 + $0x40] sm:$0xff] %v226
    // Predicated region
    $region26: #{tpu_custom_call.1} parent=1 // pred_check
      _
    $region27: #{tpu_custom_call.1} parent=1 // pred_check_branch
      %237 = sbr.rel (0) target = $region29
    $region28: #{tpu_custom_call.1} parent=1 // pred_region
      %239 = vsyncadd [#allocation4], 0
      %s240 = sshll.u32 [#allocation7], 4
      %s241 = int_to_ptr.vmem [resolvable:$true] %s240
      %s242 = sshll.u32 %s4, 4
      %s243 = int_to_ptr.hbm [resolvable:$true] %s242
      %248 = dma.vmem_to_hbm [thread:$0]  %s241, 1152, %s243, [#allocation4], 128, 128, 8
    $region29: #{tpu_custom_call.1} parent=1 // pred_fallthru
      _
    // Predicated region
    $region30: #{tpu_custom_call.1} parent=1 // pred_check
      _
    $region31: #{tpu_custom_call.1} parent=1 // pred_check_branch
      %250 = sbr.rel (0) target = $region33
    $region32: #{tpu_custom_call.1} parent=1 // pred_region
      %252 = dma.done [#allocation4], 1152
    $region33: #{tpu_custom_call.1} parent=1 // pred_fallthru
      _
    %253 = vsyncpa [#allocation3], 1
    %254 = vsyncpa [#allocation6], 1
    %255 = vsyncpa [#allocation4], 1

</llo_original>
